<compile_context>
chip_gen: v6e
topology: v6e:2x2x1
jax: 0.10.0
libtpu: 0.0.40
codegen_flags: <defaults>
</compile_context>

<pallas_src>
import numpy as np
import jax
import jax.numpy as jnp
from jax.experimental import pallas as pl
from jax.experimental.pallas import tpu as pltpu

HIDDEN = 256
NUM_CLASSES = 2
SUBLANE = 8            # f32 sublane count -> batch-tile granularity
LANE = 128             # lane width -> feature (D) alignment
MAX_TILE_ROWS = 1024   # default cap on the batch tile (HBM-roofline sweet spot)
VMEM_BUDGET = 40 * 1024 * 1024   # per-tile working-set target (safe under v7x's 64 MiB physical)
VMEM_LIMIT = 48 * 1024 * 1024    # explicit scoped-VMEM limit handed to Mosaic


def ff_classifier_kernel(x_ref, w1_ref, b1_ref, w2_ref, b2_ref, out_ref):
    """One fused pass over a batch tile.

    x_ref  : (TB, D_pad)           input tile (f32 or bf16)
    w1_ref : (D_pad, HIDDEN)       first Linear weight, pre-transposed to (in, out)
    b1_ref : (1, HIDDEN)           f32
    w2_ref : (HIDDEN, NUM_CLASSES) second Linear weight
    b2_ref : (1, NUM_CLASSES)      f32
    out_ref: (TB, NUM_CLASSES)     f32 logits (narrow store -> tiny HBM writeback)
    """
    h = jnp.dot(x_ref[...], w1_ref[...], preferred_element_type=jnp.float32)
    h = jnp.maximum(h + b1_ref[...], 0.0)
    # TODO(synk): nn.Dropout(p=0.5) is only active in training mode; eval-mode forward
    #             (dropout == identity) is implemented here.
    logits = jnp.dot(h.astype(w2_ref.dtype), w2_ref[...],
                     preferred_element_type=jnp.float32) + b2_ref[...]
    out_ref[...] = logits.astype(out_ref.dtype)


def _round_up(n, m):
    return ((n + m - 1) // m) * m


def _choose_batch_tiling(batch, d_pad, in_itemsize, w_itemsize, max_tile_rows):
    """Pick (tile_rows, padded_batch, num_tiles) so that:
       * the double-buffered working set stays under VMEM_BUDGET (fits v7x's 64 MiB VMEM),
       * tiles are as large as possible (this kernel is HBM-bandwidth bound),
       * batch over-padding is bounded by ~8 rows per tile (no round-up-to-tile blowup),
       * the grid has >= 2 tiles when there is enough work (feeds both v7x TensorCores)."""
    # VMEM accounting.  The default pipeline double-buffers every operand, including the
    # grid-invariant weights (they are only DMA'd once but still occupy two buffers).
    weight_bytes = 2 * (d_pad * HIDDEN * w_itemsize + HIDDEN * 4
                        + HIDDEN * NUM_CLASSES * w_itemsize + NUM_CLASSES * 4)
    per_row = (2 * d_pad * in_itemsize      # double-buffered x tile
               + 2 * NUM_CLASSES * 4        # double-buffered output tile
               + HIDDEN * 4)                # live f32 hidden activation
    avail = max(VMEM_BUDGET - weight_bytes, per_row * SUBLANE)
    tile_cap = max(SUBLANE, min(max_tile_rows, (avail // per_row) // SUBLANE * SUBLANE))

    rows = _round_up(batch, SUBLANE)
    num_tiles = max(1, pl.cdiv(rows, tile_cap))
    if num_tiles == 1 and rows >= 2 * 256:
        num_tiles = 2          # give v7x's two TensorCores work; ~free on 1-TC chips
    tile_rows = _round_up(pl.cdiv(rows, num_tiles), SUBLANE)
    return tile_rows, tile_rows * num_tiles, num_tiles


def init_params(key, input_shape):
    """Params matching PyTorch nn.Linear init (uniform +-1/sqrt(fan_in)),
    stored pre-transposed as (in_features, out_features)."""
    k1, k2, k3, k4 = jax.random.split(key, 4)
    s1 = 1.0 / np.sqrt(input_shape)
    s2 = 1.0 / np.sqrt(HIDDEN)
    w1 = jax.random.uniform(k1, (input_shape, HIDDEN), jnp.float32, -s1, s1)
    b1 = jax.random.uniform(k2, (1, HIDDEN), jnp.float32, -s1, s1)
    w2 = jax.random.uniform(k3, (HIDDEN, NUM_CLASSES), jnp.float32, -s2, s2)
    b2 = jax.random.uniform(k4, (1, NUM_CLASSES), jnp.float32, -s2, s2)
    return w1, b1, w2, b2


def ff_hallucination_classifier(x, params, *, compute_dtype=jnp.float32,
                                max_tile_rows=MAX_TILE_ROWS):
    """Eval-mode forward of FFHallucinationClassifier.

    x: (B, D) or (D,).  Returns f32 logits of shape (B, NUM_CLASSES) (or (NUM_CLASSES,)).
    compute_dtype=jnp.bfloat16 halves the dominant HBM streams (x, w1) and uses the native
    bf16 MXU path; accumulation, biases, ReLU and logits stay f32.
    """
    w1, b1, w2, b2 = params
    squeeze = x.ndim == 1
    if squeeze:
        x = x[None]
    B, D = x.shape

    x = x.astype(compute_dtype)
    w1 = w1.astype(compute_dtype)
    w2 = w2.astype(compute_dtype)
    b1 = b1.astype(jnp.float32)
    b2 = b2.astype(jnp.float32)

    # Pad the feature dim to a lane multiple: zero columns in x + zero rows in w1 contribute
    # nothing to the matmul, but keep loads unmasked and the MXU K dimension aligned.
    d_pad = _round_up(D, LANE)
    if d_pad != D:
        x = jnp.pad(x, ((0, 0), (0, d_pad - D)))
        w1 = jnp.pad(w1, ((0, d_pad - D), (0, 0)))

    in_item = jnp.dtype(compute_dtype).itemsize
    tb, padded_B, num_tiles = _choose_batch_tiling(B, d_pad, in_item, in_item, max_tile_rows)
    if padded_B != B:
        # Padded rows compute relu(b1) @ w2 + b2 garbage; they are sliced off below and
        # must never be reduced over before slicing.
        x = jnp.pad(x, ((0, padded_B - B), (0, 0)))

    weight_read_bytes = (d_pad * HIDDEN * in_item + HIDDEN * 4
                         + HIDDEN * NUM_CLASSES * in_item + NUM_CLASSES * 4)
    cost = pl.CostEstimate(
        flops=2 * padded_B * (d_pad * HIDDEN + HIDDEN * NUM_CLASSES),
        transcendentals=0,
        bytes_accessed=(padded_B * d_pad * in_item          # input read
                        + weight_read_bytes                 # resident weights (read once)
                        + padded_B * NUM_CLASSES * 4),      # narrow logits writeback
    )

    out = pl.pallas_call(
        ff_classifier_kernel,
        out_shape=jax.ShapeDtypeStruct((padded_B, NUM_CLASSES), jnp.float32),
        grid=(num_tiles,),
        in_specs=[
            pl.BlockSpec((tb, d_pad), lambda i: (i, 0)),              # x batch tile (streamed)
            pl.BlockSpec((d_pad, HIDDEN), lambda i: (0, 0)),          # w1 (VMEM resident)
            pl.BlockSpec((1, HIDDEN), lambda i: (0, 0)),              # b1
            pl.BlockSpec((HIDDEN, NUM_CLASSES), lambda i: (0, 0)),    # w2 (VMEM resident)
            pl.BlockSpec((1, NUM_CLASSES), lambda i: (0, 0)),         # b2
        ],
        out_specs=pl.BlockSpec((tb, NUM_CLASSES), lambda i: (i, 0)),  # narrow logits block
        compiler_params=pltpu.CompilerParams(
            dimension_semantics=("parallel",),
            vmem_limit_bytes=VMEM_LIMIT),
        cost_estimate=cost,
    )(x, w1, b1, w2, b2)

    if padded_B != B:
        out = out[:B]
    return out[0] if squeeze else out


def reference_forward(x, params):
    """Pure-JAX reference with identical (eval-mode) semantics."""
    w1, b1, w2, b2 = params
    if x.ndim == 1:
        x = x[None]
    h = jnp.maximum(x.astype(jnp.float32) @ w1 + b1, 0.0)
    return h @ w2 + b2


if __name__ == "__main__":
    key = jax.random.PRNGKey(0)
    pkey, xkey = jax.random.split(key)

    B, D = 2, 128                      # small shapes consistent with the module
    params = init_params(pkey, D)
    x = jax.random.normal(xkey, (B, D), dtype=jnp.float32)

    ref = reference_forward(x, params)

    # Default exact (f32) path.
    out = jax.block_until_ready(ff_hallucination_classifier(x, params))
    assert out.shape == (B, NUM_CLASSES)
    np.testing.assert_allclose(np.asarray(out), np.asarray(ref), rtol=1e-5, atol=1e-5)

    # Optional bandwidth-saving bf16 streaming path (f32 accumulation), looser tolerance.
    out_bf16 = jax.block_until_ready(
        ff_hallucination_classifier(x, params, compute_dtype=jnp.bfloat16))
    np.testing.assert_allclose(np.asarray(out_bf16), np.asarray(ref), rtol=2e-2, atol=2e-2)

    print("KERNEL_OK")
</pallas_src>

<mosaic_0001>
module attributes {stable_mosaic.version = 11 : i64} {
  func.func @ff_classifier_kernel(%arg0: i32, %arg1: memref<8x128xf32, #tpu.memory_space<vmem>>, %arg2: memref<128x256xf32, #tpu.memory_space<vmem>>, %arg3: memref<1x256xf32, #tpu.memory_space<vmem>>, %arg4: memref<256x2xf32, #tpu.memory_space<vmem>>, %arg5: memref<1x2xf32, #tpu.memory_space<vmem>>, %arg6: memref<8x2xf32, #tpu.memory_space<vmem>>) attributes {dimension_semantics = [#tpu.dimension_semantics<parallel>], iteration_bounds = array<i64: 1>, scalar_prefetch = 0 : i64, scratch_operands = 0 : i64, tpu.core_type = #tpu.core_type<tc>, window_params = [{transform_indices = @transform_0, window_bounds = array<i64: 8, 128>}, {pipeline_mode = #tpu.pipeline_mode<synchronous>, transform_indices = @transform_1, window_bounds = array<i64: 128, 256>}, {pipeline_mode = #tpu.pipeline_mode<synchronous>, transform_indices = @transform_2, window_bounds = array<i64: 1, 256>}, {pipeline_mode = #tpu.pipeline_mode<synchronous>, transform_indices = @transform_3, window_bounds = array<i64: 256, 2>}, {pipeline_mode = #tpu.pipeline_mode<synchronous>, transform_indices = @transform_4, window_bounds = array<i64: 1, 2>}, {transform_indices = @transform_5, window_bounds = array<i64: 8, 2>}]} {
    %c0 = arith.constant 0 : index
    %c0_0 = arith.constant 0 : index
    %0 = vector.load %arg1[%c0, %c0_0] : memref<8x128xf32, #tpu.memory_space<vmem>>, vector<8x128xf32>
    %c0_1 = arith.constant 0 : index
    %c0_2 = arith.constant 0 : index
    %1 = vector.load %arg2[%c0_1, %c0_2] : memref<128x256xf32, #tpu.memory_space<vmem>>, vector<128x256xf32>
    %cst = arith.constant dense<0.000000e+00> : vector<8x256xf32>
    %2 = tpu.matmul %0, %1, %cst {dimension_numbers = #tpu.dot_dimension_numbers<[1], [0], [0], [1], [0, 0, 1, 1], [], []>} : vector<8x128xf32>, vector<128x256xf32>, vector<8x256xf32> -> vector<8x256xf32>
    %c0_3 = arith.constant 0 : index
    %c0_4 = arith.constant 0 : index
    %3 = vector.load %arg3[%c0_3, %c0_4] : memref<1x256xf32, #tpu.memory_space<vmem>>, vector<1x256xf32>
    %4 = vector.broadcast %3 : vector<1x256xf32> to vector<8x256xf32>
    %5 = arith.addf %2, %4 : vector<8x256xf32>
    %cst_5 = arith.constant 0.000000e+00 : f32
    %6 = vector.broadcast %cst_5 : f32 to vector<8x256xf32>
    %7 = arith.maximumf %5, %6 : vector<8x256xf32>
    %c0_6 = arith.constant 0 : index
    %c0_7 = arith.constant 0 : index
    %8 = vector.load %arg4[%c0_6, %c0_7] : memref<256x2xf32, #tpu.memory_space<vmem>>, vector<256x2xf32>
    %cst_8 = arith.constant dense<0.000000e+00> : vector<8x2xf32>
    %9 = tpu.matmul %7, %8, %cst_8 {dimension_numbers = #tpu.dot_dimension_numbers<[1], [0], [0], [1], [0, 0, 1, 1], [], []>} : vector<8x256xf32>, vector<256x2xf32>, vector<8x2xf32> -> vector<8x2xf32>
    %c0_9 = arith.constant 0 : index
    %c0_10 = arith.constant 0 : index
    %10 = vector.load %arg5[%c0_9, %c0_10] : memref<1x2xf32, #tpu.memory_space<vmem>>, vector<1x2xf32>
    %11 = vector.broadcast %10 : vector<1x2xf32> to vector<8x2xf32>
    %12 = arith.addf %9, %11 : vector<8x2xf32>
    %c0_11 = arith.constant 0 : index
    %c0_12 = arith.constant 0 : index
    %13 = vector.load %arg6[%c0_11, %c0_12] : memref<8x2xf32, #tpu.memory_space<vmem>>, vector<8x2xf32>
    tpu.vector_store %arg6[%c0_11, %c0_12], %12 {strides = array<i32>} : memref<8x2xf32, #tpu.memory_space<vmem>>, vector<8x2xf32>,
    return
  }
  func.func @transform_0(%arg0: i32) -> (i32, i32) {
    %c0_i32 = arith.constant 0 : i32
    %c0_i32_0 = arith.constant 0 : i32
    return %arg0, %c0_i32 : i32, i32
  }
  func.func @transform_1(%arg0: i32) -> (i32, i32) {
    %c0_i32 = arith.constant 0 : i32
    %c0_i32_0 = arith.constant 0 : i32
    %c0_i32_1 = arith.constant 0 : i32
    return %c0_i32, %c0_i32_0 : i32, i32
  }
  func.func @transform_2(%arg0: i32) -> (i32, i32) {
    %c0_i32 = arith.constant 0 : i32
    %c0_i32_0 = arith.constant 0 : i32
    %c0_i32_1 = arith.constant 0 : i32
    return %c0_i32, %c0_i32_0 : i32, i32
  }
  func.func @transform_3(%arg0: i32) -> (i32, i32) {
    %c0_i32 = arith.constant 0 : i32
    %c0_i32_0 = arith.constant 0 : i32
    %c0_i32_1 = arith.constant 0 : i32
    return %c0_i32, %c0_i32_0 : i32, i32
  }
  func.func @transform_4(%arg0: i32) -> (i32, i32) {
    %c0_i32 = arith.constant 0 : i32
    %c0_i32_0 = arith.constant 0 : i32
    %c0_i32_1 = arith.constant 0 : i32
    return %c0_i32, %c0_i32_0 : i32, i32
  }
  func.func @transform_5(%arg0: i32) -> (i32, i32) {
    %c0_i32 = arith.constant 0 : i32
    %c0_i32_0 = arith.constant 0 : i32
    return %arg0, %c0_i32 : i32, i32
  }
}

</mosaic_0001>

<llo_original>
// kernel: tpu_custom_call.1
$region0: #{tpu_custom_call.1}
  #allocation0 [shape = 'u32[]', space=smem, size = 0x4, offset = 0x4, fixed_abs, tag = 'smem constant byte address 0x4 - core index']
  #allocation1 [shape = 'u32[144,128]{1,0:T(1,128)}', space=vmem, size = 0x12000, scoped, tag = 'internal scratch']
  %s0 = inlined_call_operand.hbm [shape: f32[8,128], index: 0, kind: input, shape index: {}]
  %s1 = inlined_call_operand.vmem [shape: f32[128,256], index: 1, kind: input, shape index: {}]
  %s2 = inlined_call_operand.vmem [shape: f32[1,256], index: 2, kind: input, shape index: {}]
  %s3 = inlined_call_operand.vmem [shape: f32[256,2], index: 3, kind: input, shape index: {}]
  %s4 = inlined_call_operand.vmem [shape: f32[1,2], index: 4, kind: input, shape index: {}]
  %s5 = inlined_call_operand.vmem [shape: f32[8,2], index: 5, kind: output, shape index: {}]
  %s6 = sld [smem:[#allocation0]]
  $region34: #{tpu_custom_call.1} parent=0
    _
  %s8 = ssub.s32 1, %s6
  %s9 = scalar_select 0, %s8, %s6
  $region1: #{tpu_custom_call.1} parent=0
    #allocation2 [shape = 'u8[4096]{0}', space=vmem, size = 0x1000, scoped, tag = 'input window, operand 0, single buffered']
    #allocation3 [shape = 's32[1]{0}', space=sflag, size = 0x4, scoped, tag = 'scoped memory for tpu_custom_call.1']
    %10 = vsyncpa [#allocation3], 0
    // Predicated region
    $region2: #{tpu_custom_call.1} parent=1 // pred_check
      _
    $region3: #{tpu_custom_call.1} parent=1 // pred_check_branch
      %12 = sbr.rel (0) target = $region5
    $region4: #{tpu_custom_call.1} parent=1 // pred_region
      %s14 = ssub.s32 128, 128
      %15 = vsyncadd [#allocation3], %s14
      %s17 = sshll.u32 [#allocation2], 4
      %s18 = int_to_ptr.vmem [resolvable:$true] %s17
      %20 = dma.hbm_to_vmem [thread:$0]  %s0, 128, %s18, [#allocation3]
    $region5: #{tpu_custom_call.1} parent=1 // pred_fallthru
      _
    // Predicated region
    $region6: #{tpu_custom_call.1} parent=1 // pred_check
      _
    $region7: #{tpu_custom_call.1} parent=1 // pred_check_branch
      %22 = sbr.rel (0) target = $region9
    $region8: #{tpu_custom_call.1} parent=1 // pred_region
      _
    $region9: #{tpu_custom_call.1} parent=1 // pred_fallthru
      _
    // Predicated region
    $region10: #{tpu_custom_call.1} parent=1 // pred_check
      _
    $region11: #{tpu_custom_call.1} parent=1 // pred_check_branch
      %24 = sbr.rel (0) target = $region13
    $region12: #{tpu_custom_call.1} parent=1 // pred_region
      _
    $region13: #{tpu_custom_call.1} parent=1 // pred_fallthru
      _
    // Predicated region
    $region14: #{tpu_custom_call.1} parent=1 // pred_check
      _
    $region15: #{tpu_custom_call.1} parent=1 // pred_check_branch
      %26 = sbr.rel (0) target = $region17
    $region16: #{tpu_custom_call.1} parent=1 // pred_region
      _
    $region17: #{tpu_custom_call.1} parent=1 // pred_fallthru
      _
    // Predicated region
    $region18: #{tpu_custom_call.1} parent=1 // pred_check
      _
    $region19: #{tpu_custom_call.1} parent=1 // pred_check_branch
      %28 = sbr.rel (0) target = $region21
    $region20: #{tpu_custom_call.1} parent=1 // pred_region
      _
    $region21: #{tpu_custom_call.1} parent=1 // pred_fallthru
      _
    // Predicated region
    $region22: #{tpu_custom_call.1} parent=1 // pred_check
      _
    $region23: #{tpu_custom_call.1} parent=1 // pred_check_branch
      %30 = sbr.rel (0) target = $region25
    $region24: #{tpu_custom_call.1} parent=1 // pred_region
      %31 = dma.done [#allocation3], 128
    $region25: #{tpu_custom_call.1} parent=1 // pred_fallthru
      _
    %v32 = vld [vmem:[#allocation2] sm:$0xff]
    %v33 = vld [vmem:[%s1] sm:$0xff]
    %v34 = vld [vmem:[%s1 + $0x8] sm:$0xff]
    %v35 = vld [vmem:[%s1 + $0x10] sm:$0xff]
    %v36 = vld [vmem:[%s1 + $0x18] sm:$0xff]
    %v37 = vld [vmem:[%s1 + $0x20] sm:$0xff]
    %v38 = vld [vmem:[%s1 + $0x28] sm:$0xff]
    %v39 = vld [vmem:[%s1 + $0x30] sm:$0xff]
    %v40 = vld [vmem:[%s1 + $0x38] sm:$0xff]
    %v41 = vld [vmem:[%s1 + $0x40] sm:$0xff]
    %v42 = vld [vmem:[%s1 + $0x48] sm:$0xff]
    %v43 = vld [vmem:[%s1 + $0x50] sm:$0xff]
    %v44 = vld [vmem:[%s1 + $0x58] sm:$0xff]
    %v45 = vld [vmem:[%s1 + $0x60] sm:$0xff]
    %v46 = vld [vmem:[%s1 + $0x68] sm:$0xff]
    %v47 = vld [vmem:[%s1 + $0x70] sm:$0xff]
    %v48 = vld [vmem:[%s1 + $0x78] sm:$0xff]
    %v49 = vld [vmem:[%s1 + $0x80] sm:$0xff]
    %v50 = vld [vmem:[%s1 + $0x88] sm:$0xff]
    %v51 = vld [vmem:[%s1 + $0x90] sm:$0xff]
    %v52 = vld [vmem:[%s1 + $0x98] sm:$0xff]
    %v53 = vld [vmem:[%s1 + $0xa0] sm:$0xff]
    %v54 = vld [vmem:[%s1 + $0xa8] sm:$0xff]
    %v55 = vld [vmem:[%s1 + $0xb0] sm:$0xff]
    %v56 = vld [vmem:[%s1 + $0xb8] sm:$0xff]
    %v57 = vld [vmem:[%s1 + $0xc0] sm:$0xff]
    %v58 = vld [vmem:[%s1 + $0xc8] sm:$0xff]
    %v59 = vld [vmem:[%s1 + $0xd0] sm:$0xff]
    %v60 = vld [vmem:[%s1 + $0xd8] sm:$0xff]
    %v61 = vld [vmem:[%s1 + $0xe0] sm:$0xff]
    %v62 = vld [vmem:[%s1 + $0xe8] sm:$0xff]
    %v63 = vld [vmem:[%s1 + $0xf0] sm:$0xff]
    %v64 = vld [vmem:[%s1 + $0xf8] sm:$0xff]
    %v65 = vld [vmem:[%s2] sm:$0x3]
    %v67 = vlaneseq
    %v68 = vshrl.u32 %v67, 7
    %v69 = vsub.s32 0, %v68
    %v70 = vrot.slane %v65, %v69
    %v71 = vlaneseq
    %v72 = vshrl.u32 %v71, 7
    %v73 = vsub.s32 1, %v72
    %v74 = vrot.slane %v65, %v73
    %77 = vmatprep.subr.mxu0 %v64
    %78 = vmatpush1.msra.mxu0 %v63
    %79 = vmatprep.subr.mxu0 %v62
    %80 = vmatpush1.msra.mxu0 %v61
    %81 = vmatprep.subr.mxu0 %v60
    %82 = vmatpush1.msra.mxu0 %v59
    %83 = vmatprep.subr.mxu0 %v58
    %84 = vmatpush1.msra.mxu0 %v57
    %85 = vmatprep.subr.mxu0 %v56
    %86 = vmatpush1.msra.mxu0 %v55
    %87 = vmatprep.subr.mxu0 %v54
    %88 = vmatpush1.msra.mxu0 %v53
    %89 = vmatprep.subr.mxu0 %v52
    %90 = vmatpush1.msra.mxu0 %v51
    %91 = vmatprep.subr.mxu0 %v50
    %92 = vmatpush1.msra.mxu0 %v49
    %93 = vmatprep.subr.mxu0 %v48
    %94 = vmatpush1.msra.mxu0 %v47
    %95 = vmatprep.subr.mxu0 %v46
    %96 = vmatpush1.msra.mxu0 %v45
    %97 = vmatprep.subr.mxu0 %v44
    %98 = vmatpush1.msra.mxu0 %v43
    %99 = vmatprep.subr.mxu0 %v42
    %100 = vmatpush1.msra.mxu0 %v41
    %101 = vmatprep.subr.mxu0 %v40
    %102 = vmatpush1.msra.mxu0 %v39
    %103 = vmatprep.subr.mxu0 %v38
    %104 = vmatpush1.msra.mxu0 %v37
    %105 = vmatprep.subr.mxu0 %v36
    %106 = vmatpush1.msra.mxu0 %v35
    %107 = vmatprep.subr.mxu0 %v34
    %108 = vmatpush1.msra.mxu0 %v33
    %109 = vmatprep.subr.mxu0 0.0
    %110 = vmatpush2.msra.mxu0 0.0
    %111 = vmatprep.subr.mxu0 0.0
    %112 = vmatpush2.msra.mxu0 0.0
    %113 = vmatprep.subr.mxu0 0.0
    %114 = vmatpush2.msra.mxu0 0.0
    %115 = vmatprep.subr.mxu0 0.0
    %116 = vmatpush2.msra.mxu0 0.0
    %117 = vmatprep.subr.mxu0 0.0
    %118 = vmatpush2.msra.mxu0 0.0
    %119 = vmatprep.subr.mxu0 0.0
    %120 = vmatpush2.msra.mxu0 0.0
    %121 = vmatprep.subr.mxu0 0.0
    %122 = vmatpush2.msra.mxu0 0.0
    %123 = vmatprep.subr.mxu0 0.0
    %124 = vmatpush2.msra.mxu0 0.0
    %125 = vmatprep.subr.mxu0 0.0
    %126 = vmatpush2.msra.mxu0 0.0
    %127 = vmatprep.subr.mxu0 0.0
    %128 = vmatpush2.msra.mxu0 0.0
    %129 = vmatprep.subr.mxu0 0.0
    %130 = vmatpush2.msra.mxu0 0.0
    %131 = vmatprep.subr.mxu0 0.0
    %132 = vmatpush2.msra.mxu0 0.0
    %133 = vmatprep.subr.mxu0 0.0
    %134 = vmatpush2.msra.mxu0 0.0
    %135 = vmatprep.subr.mxu0 0.0
    %136 = vmatpush2.msra.mxu0 0.0
    %137 = vmatprep.subr.mxu0 0.0
    %138 = vmatpush2.msra.mxu0 0.0
    %139 = vmatprep.subr.mxu0 0.0
    %140 = vmatpush2.msra.mxu0 0.0
    %141 = vmatprep.mubr.f32.mxu0 0.0
    %142 = vmatmul.mubr.f32.gmra.mxu0 %v32
    %v143 = vpop.f32.mrf.mxu0
    %v144 = vadd.f32 %v70, %v143
    %v145 = vpop.f32.mrf.mxu0
    %v146 = vadd.f32 %v74, %v145
    %147 = vdwg.mxu0
    %v148 = vmax.f32 %v144, 0.0
    %v149 = vmax.f32 %v146, 0.0
    %v150 = vld [vmem:[%s3] sm:$0xff]
    %v151 = vld [vmem:[%s3 + $0x8] sm:$0xff]
    %v152 = vld [vmem:[%s3 + $0x10] sm:$0xff]
    %v153 = vld [vmem:[%s3 + $0x18] sm:$0xff]
    %v154 = vld [vmem:[%s3 + $0x20] sm:$0xff]
    %v155 = vld [vmem:[%s3 + $0x28] sm:$0xff]
    %v156 = vld [vmem:[%s3 + $0x30] sm:$0xff]
    %v157 = vld [vmem:[%s3 + $0x38] sm:$0xff]
    %v158 = vld [vmem:[%s3 + $0x40] sm:$0xff]
    %v159 = vld [vmem:[%s3 + $0x48] sm:$0xff]
    %v160 = vld [vmem:[%s3 + $0x50] sm:$0xff]
    %v161 = vld [vmem:[%s3 + $0x58] sm:$0xff]
    %v162 = vld [vmem:[%s3 + $0x60] sm:$0xff]
    %v163 = vld [vmem:[%s3 + $0x68] sm:$0xff]
    %v164 = vld [vmem:[%s3 + $0x70] sm:$0xff]
    %v165 = vld [vmem:[%s3 + $0x78] sm:$0xff]
    %v166 = vld [vmem:[%s3 + $0x80] sm:$0xff]
    %v167 = vld [vmem:[%s3 + $0x88] sm:$0xff]
    %v168 = vld [vmem:[%s3 + $0x90] sm:$0xff]
    %v169 = vld [vmem:[%s3 + $0x98] sm:$0xff]
    %v170 = vld [vmem:[%s3 + $0xa0] sm:$0xff]
    %v171 = vld [vmem:[%s3 + $0xa8] sm:$0xff]
    %v172 = vld [vmem:[%s3 + $0xb0] sm:$0xff]
    %v173 = vld [vmem:[%s3 + $0xb8] sm:$0xff]
    %v174 = vld [vmem:[%s3 + $0xc0] sm:$0xff]
    %v175 = vld [vmem:[%s3 + $0xc8] sm:$0xff]
    %v176 = vld [vmem:[%s3 + $0xd0] sm:$0xff]
    %v177 = vld [vmem:[%s3 + $0xd8] sm:$0xff]
    %v178 = vld [vmem:[%s3 + $0xe0] sm:$0xff]
    %v179 = vld [vmem:[%s3 + $0xe8] sm:$0xff]
    %v180 = vld [vmem:[%s3 + $0xf0] sm:$0xff]
    %v181 = vld [vmem:[%s3 + $0xf8] sm:$0xff]
    %v182 = vld [vmem:[%s4] sm:$0x1]
    %v184 = vlaneseq
    %v185 = vshrl.u32 %v184, 7
    %v186 = vsub.s32 0, %v185
    %v187 = vrot.slane %v182, %v186
    %189 = vmatprep.subr.mxu0 0.0
    %190 = vmatpush1.msra.mxu0 %v165
    %191 = vmatprep.subr.mxu0 0.0
    %192 = vmatpush1.msra.mxu0 %v164
    %193 = vmatprep.subr.mxu0 0.0
    %194 = vmatpush1.msra.mxu0 %v163
    %195 = vmatprep.subr.mxu0 0.0
    %196 = vmatpush1.msra.mxu0 %v162
    %197 = vmatprep.subr.mxu0 0.0
    %198 = vmatpush1.msra.mxu0 %v161
    %199 = vmatprep.subr.mxu0 0.0
    %200 = vmatpush1.msra.mxu0 %v160
    %201 = vmatprep.subr.mxu0 0.0
    %202 = vmatpush1.msra.mxu0 %v159
    %203 = vmatprep.subr.mxu0 0.0
    %204 = vmatpush1.msra.mxu0 %v158
    %205 = vmatprep.subr.mxu0 0.0
    %206 = vmatpush1.msra.mxu0 %v157
    %207 = vmatprep.subr.mxu0 0.0
    %208 = vmatpush1.msra.mxu0 %v156
    %209 = vmatprep.subr.mxu0 0.0
    %210 = vmatpush1.msra.mxu0 %v155
    %211 = vmatprep.subr.mxu0 0.0
    %212 = vmatpush1.msra.mxu0 %v154
    %213 = vmatprep.subr.mxu0 0.0
    %214 = vmatpush1.msra.mxu0 %v153
    %215 = vmatprep.subr.mxu0 0.0
    %216 = vmatpush1.msra.mxu0 %v152
    %217 = vmatprep.subr.mxu0 0.0
    %218 = vmatpush1.msra.mxu0 %v151
    %219 = vmatprep.subr.mxu0 0.0
    %220 = vmatpush1.msra.mxu0 %v150
    %221 = vmatprep.subr.mxu0 0.0
    %222 = vmatpush2.msra.mxu0 %v181
    %223 = vmatprep.subr.mxu0 0.0
    %224 = vmatpush2.msra.mxu0 %v180
    %225 = vmatprep.subr.mxu0 0.0
    %226 = vmatpush2.msra.mxu0 %v179
    %227 = vmatprep.subr.mxu0 0.0
    %228 = vmatpush2.msra.mxu0 %v178
    %229 = vmatprep.subr.mxu0 0.0
    %230 = vmatpush2.msra.mxu0 %v177
    %231 = vmatprep.subr.mxu0 0.0
    %232 = vmatpush2.msra.mxu0 %v176
    %233 = vmatprep.subr.mxu0 0.0
    %234 = vmatpush2.msra.mxu0 %v175
    %235 = vmatprep.subr.mxu0 0.0
    %236 = vmatpush2.msra.mxu0 %v174
    %237 = vmatprep.subr.mxu0 0.0
    %238 = vmatpush2.msra.mxu0 %v173
    %239 = vmatprep.subr.mxu0 0.0
    %240 = vmatpush2.msra.mxu0 %v172
    %241 = vmatprep.subr.mxu0 0.0
    %242 = vmatpush2.msra.mxu0 %v171
    %243 = vmatprep.subr.mxu0 0.0
    %244 = vmatpush2.msra.mxu0 %v170
    %245 = vmatprep.subr.mxu0 0.0
    %246 = vmatpush2.msra.mxu0 %v169
    %247 = vmatprep.subr.mxu0 0.0
    %248 = vmatpush2.msra.mxu0 %v168
    %249 = vmatprep.subr.mxu0 0.0
    %250 = vmatpush2.msra.mxu0 %v167
    %251 = vmatprep.subr.mxu0 0.0
    %252 = vmatpush2.msra.mxu0 %v166
    %253 = vmatprep.mubr.f32.mxu0 %v149
    %254 = vmatmul.mubr.f32.gmra.mxu0 %v148
    %v255 = vpop.f32.mrf.mxu0
    %v256 = vadd.f32 %v187, %v255
    %v257 = vpop.f32.mrf.mxu0
    %258 = vdwg.mxu0
    %vm259 = vcmask 15360
    %260 = vst.msk [vmem:[%s5] sm:$0xff] %vm259, %v256
    // Predicated region
    $region26: #{tpu_custom_call.1} parent=1 // pred_check
      _
    $region27: #{tpu_custom_call.1} parent=1 // pred_check_branch
      %262 = sbr.rel (0) target = $region29
    $region28: #{tpu_custom_call.1} parent=1 // pred_region
      _
    $region29: #{tpu_custom_call.1} parent=1 // pred_fallthru
      _
    // Predicated region
    $region30: #{tpu_custom_call.1} parent=1 // pred_check
      _
    $region31: #{tpu_custom_call.1} parent=1 // pred_check_branch
      %264 = sbr.rel (0) target = $region33
    $region32: #{tpu_custom_call.1} parent=1 // pred_region
      _
    $region33: #{tpu_custom_call.1} parent=1 // pred_fallthru
      _
    %265 = vsyncpa [#allocation3], 1

</llo_original>
